<compile_context>
chip_gen: v5e
topology: v5e:2x2
jax: 0.10.0
libtpu: 0.0.40
codegen_flags: <defaults>
</compile_context>

<pallas_src>
import jax
import jax.numpy as jnp
from jax import lax
from jax.experimental import pallas as pl
from jax.experimental.pallas import tpu as pltpu


def _gelu_tanh(x):
    c = 0.7978845608028654  # sqrt(2/pi)
    return 0.5 * x * (1.0 + jnp.tanh(c * (x + 0.044715 * x * x * x)))


def _round_up(a, m):
    return (a + m - 1) // m * m


def _make_fused_kernel(apply_norm: bool, apply_act: bool):
    def kernel(p_ref, w_ref, cb_ref, cs_ref, o_ref):
        x = p_ref[...]
        if apply_norm:
            # Per-column (input-channel) normalization fused ahead of the matmul.
            # Padded columns have cs == 0, so they contribute exactly 0.
            x = (x - cb_ref[...]) * cs_ref[...]
        y = jnp.dot(x, w_ref[...], preferred_element_type=jnp.float32)
        if apply_act:
            y = _gelu_tanh(y)
        o_ref[...] = y.astype(o_ref.dtype)

    return kernel


def fused_norm_matmul_act(patches, w_mat, col_bias, col_inv_sd,
                          apply_norm=True, apply_act=True, block_rows=512):
    """out = act(((patches - col_bias) * col_inv_sd) @ w_mat), rows tiled on a 1-D grid."""
    M, K = patches.shape
    N = w_mat.shape[1]

    # Lane-dense layout: pad contraction and output dims to multiples of 128.
    Kp = _round_up(K, 128)
    Np = _round_up(N, 128)

    # Row tile: biggest tile (fewest grid steps) whose streamed block stays <= ~8 MiB
    # so double-buffering + resident weights fit comfortably in scoped VMEM.
    max_tile_elems = (8 * 1024 * 1024) // 4
    tm_cap = max(8, (max_tile_elems // Kp) // 8 * 8)
    TM = min(_round_up(M, 8), _round_up(block_rows, 8), tm_cap)
    Mp = _round_up(M, TM)

    if (Mp, Kp) != (M, K):
        patches = jnp.pad(patches, ((0, Mp - M), (0, Kp - K)))
    if (Kp, Np) != (K, N):
        w_mat = jnp.pad(w_mat, ((0, Kp - K), (0, Np - N)))

    cb = jnp.pad(col_bias.reshape(1, K).astype(jnp.float32), ((0, 0), (0, Kp - K)))
    cs = jnp.pad(col_inv_sd.reshape(1, K).astype(jnp.float32), ((0, 0), (0, Kp - K)))

    kernel = _make_fused_kernel(apply_norm, apply_act)
    out = pl.pallas_call(
        kernel,
        out_shape=jax.ShapeDtypeStruct((Mp, Np), jnp.float32),
        grid_spec=pl.GridSpec(
            grid=(Mp // TM,),
            in_specs=[
                pl.BlockSpec((TM, Kp), lambda i: (i, 0)),   # streamed row tiles
                pl.BlockSpec((Kp, Np), lambda i: (0, 0)),   # resident weights
                pl.BlockSpec((1, Kp), lambda i: (0, 0)),    # per-column bias
                pl.BlockSpec((1, Kp), lambda i: (0, 0)),    # per-column 1/(sd+eps)
            ],
            out_specs=pl.BlockSpec((TM, Np), lambda i: (i, 0)),
        ),
        compiler_params=pltpu.CompilerParams(
            dimension_semantics=("parallel",),
        ),
    )(patches, w_mat, cb, cs)
    return out[:M, :N]


def hebbian_conv2d_forward(x, weight, bias, sd, stride, padding, block_rows=512):
    """HebbianConv2d.forward: GELU(conv2d((x - bias) / (sd + 1e-3), weight))."""
    B, C, H, W = x.shape
    O, _, KH, KW = weight.shape
    s, p = stride, padding
    OH = (H + 2 * p - KH) // s + 1
    OW = (W + 2 * p - KW) // s + 1

    b = bias.reshape(C)
    inv_s = 1.0 / (sd.reshape(C) + 0.001)

    # Pad spatially with the per-channel bias value so that, after the in-kernel
    # normalization (v - b) * inv_s, padded positions contribute exactly zero.
    Hp, Wp = H + 2 * p, W + 2 * p
    x_pad = jnp.broadcast_to(b.reshape(1, C, 1, 1), (B, C, Hp, Wp))
    x_pad = x_pad.at[:, :, p:p + H, p:p + W].set(x)

    # im2col: (B*OH*OW, C*KH*KW), column order (C, KH, KW) matching weight layout.
    idx_h = (jnp.arange(OH) * s)[:, None] + jnp.arange(KH)[None, :]   # (OH, KH)
    idx_w = (jnp.arange(OW) * s)[:, None] + jnp.arange(KW)[None, :]   # (OW, KW)
    xr = x_pad[:, :, idx_h, :]              # (B, C, OH, KH, Wp)
    xrc = xr[:, :, :, :, idx_w]             # (B, C, OH, KH, OW, KW)
    patches = jnp.transpose(xrc, (0, 2, 4, 1, 3, 5)).reshape(B * OH * OW, C * KH * KW)

    w_mat = weight.reshape(O, C * KH * KW).T            # (C*KH*KW, O)
    col_b = jnp.repeat(b, KH * KW)                      # (C*KH*KW,)
    col_inv_s = jnp.repeat(inv_s, KH * KW)

    out_rows = fused_norm_matmul_act(patches, w_mat, col_b, col_inv_s,
                                     apply_norm=True, apply_act=True,
                                     block_rows=block_rows)
    y = out_rows.reshape(B, OH, OW, O)
    return jnp.transpose(y, (0, 3, 1, 2))               # (B, O, OH, OW)


def hebb_encoder_forward(x, params, block_rows=512):
    for (weight, bias, sd, stride, padding) in params["conv"]:
        x = hebbian_conv2d_forward(x, weight, bias, sd, stride, padding, block_rows)
    B = x.shape[0]
    flat = x.reshape(B, -1)                              # NCHW flatten (matches torch)
    K = flat.shape[1]
    zeros = jnp.zeros((K,), jnp.float32)
    ones = jnp.ones((K,), jnp.float32)
    return fused_norm_matmul_act(flat, params["linear"], zeros, ones,
                                 apply_norm=False, apply_act=False,
                                 block_rows=block_rows)


def init_hebb_encoder(key, kernel_sizes=(3, 5, 7), strides=(2, 3, 4),
                      channel_sizes=(1, 32, 64, 128), linear_dim=512, out_dim=10):
    conv_params = []
    keys = jax.random.split(key, len(kernel_sizes) * 3 + 1)
    ki = 0
    for i, k in enumerate(kernel_sizes):
        cin, cout = channel_sizes[i], channel_sizes[i + 1]
        scale = 1.0 / jnp.sqrt(jnp.float32(cin * k * k))
        w = jax.random.normal(keys[ki], (cout, cin, k, k), jnp.float32) * scale
        ki += 1
        # The module initializes bias=0, sd=1; use non-trivial buffer values here
        # (as they would be after training) to exercise the fused normalization.
        bias = 0.1 * jax.random.normal(keys[ki], (1, cin, 1, 1), jnp.float32)
        ki += 1
        sd = 1.0 + 0.1 * jax.random.uniform(keys[ki], (1, cin, 1, 1), jnp.float32)
        ki += 1
        padding = (k - 1) // 2
        conv_params.append((w, bias, sd, strides[i], padding))
    linear = jax.random.normal(keys[ki], (linear_dim, out_dim), jnp.float32)
    return {"conv": conv_params, "linear": linear}


def reference_forward(x, params):
    """Pure-JAX reference (lax.conv) of the same forward semantics."""
    for (w, bias, sd, stride, padding) in params["conv"]:
        xn = (x - bias) / (sd + 0.001)
        y = lax.conv_general_dilated(
            xn, w, window_strides=(stride, stride),
            padding=((padding, padding), (padding, padding)),
            dimension_numbers=("NCHW", "OIHW", "NCHW"))
        x = _gelu_tanh(y)
    flat = x.reshape(x.shape[0], -1)
    return flat @ params["linear"]


if __name__ == "__main__":
    key = jax.random.PRNGKey(0)
    kx, kp = jax.random.split(key)
    # 28x28 single-channel input -> 14x14 -> 5x5 -> 2x2 with 128 ch = 512 = linear_dim
    x = jax.random.normal(kx, (2, 1, 28, 28), jnp.float32)
    params = init_hebb_encoder(kp)

    out = hebb_encoder_forward(x, params)
    out = jax.block_until_ready(out)

    ref = reference_forward(x, params)
    assert out.shape == (2, 10), out.shape
    max_diff = jnp.max(jnp.abs(out - ref))
    assert jnp.allclose(out, ref, atol=1e-3, rtol=1e-3), f"max abs diff {max_diff}"

    print("KERNEL_OK")
</pallas_src>

<mosaic_0001>
module attributes {stable_mosaic.version = 11 : i64} {
  func.func @kernel(%arg0: i32, %arg1: memref<392x128xf32, #tpu.memory_space<vmem>>, %arg2: memref<128x128xf32, #tpu.memory_space<vmem>>, %arg3: memref<1x128xf32, #tpu.memory_space<vmem>>, %arg4: memref<1x128xf32, #tpu.memory_space<vmem>>, %arg5: memref<392x128xf32, #tpu.memory_space<vmem>>) attributes {dimension_semantics = [#tpu.dimension_semantics<parallel>], iteration_bounds = array<i64: 1>, scalar_prefetch = 0 : i64, scratch_operands = 0 : i64, tpu.core_type = #tpu.core_type<tc>, window_params = [{transform_indices = @transform_0, window_bounds = array<i64: 392, 128>}, {pipeline_mode = #tpu.pipeline_mode<synchronous>, transform_indices = @transform_1, window_bounds = array<i64: 128, 128>}, {pipeline_mode = #tpu.pipeline_mode<synchronous>, transform_indices = @transform_2, window_bounds = array<i64: 1, 128>}, {pipeline_mode = #tpu.pipeline_mode<synchronous>, transform_indices = @transform_3, window_bounds = array<i64: 1, 128>}, {transform_indices = @transform_4, window_bounds = array<i64: 392, 128>}]} {
    %c0 = arith.constant 0 : index
    %c0_0 = arith.constant 0 : index
    %0 = vector.load %arg1[%c0, %c0_0] : memref<392x128xf32, #tpu.memory_space<vmem>>, vector<392x128xf32>
    %c0_1 = arith.constant 0 : index
    %c0_2 = arith.constant 0 : index
    %1 = vector.load %arg3[%c0_1, %c0_2] : memref<1x128xf32, #tpu.memory_space<vmem>>, vector<1x128xf32>
    %2 = vector.broadcast %1 : vector<1x128xf32> to vector<392x128xf32>
    %3 = arith.subf %0, %2 : vector<392x128xf32>
    %c0_3 = arith.constant 0 : index
    %c0_4 = arith.constant 0 : index
    %4 = vector.load %arg4[%c0_3, %c0_4] : memref<1x128xf32, #tpu.memory_space<vmem>>, vector<1x128xf32>
    %5 = vector.broadcast %4 : vector<1x128xf32> to vector<392x128xf32>
    %6 = arith.mulf %3, %5 : vector<392x128xf32>
    %c0_5 = arith.constant 0 : index
    %c0_6 = arith.constant 0 : index
    %7 = vector.load %arg2[%c0_5, %c0_6] : memref<128x128xf32, #tpu.memory_space<vmem>>, vector<128x128xf32>
    %cst = arith.constant dense<0.000000e+00> : vector<392x128xf32>
    %8 = tpu.matmul %6, %7, %cst {dimension_numbers = #tpu.dot_dimension_numbers<[1], [0], [0], [1], [0, 0, 1, 1], [], []>} : vector<392x128xf32>, vector<128x128xf32>, vector<392x128xf32> -> vector<392x128xf32>
    %cst_7 = arith.constant 5.000000e-01 : f32
    %9 = vector.broadcast %cst_7 : f32 to vector<392x128xf32>
    %10 = arith.mulf %9, %8 : vector<392x128xf32>
    %cst_8 = arith.constant 4.471500e-02 : f32
    %11 = vector.broadcast %cst_8 : f32 to vector<392x128xf32>
    %12 = arith.mulf %11, %8 : vector<392x128xf32>
    %13 = arith.mulf %12, %8 : vector<392x128xf32>
    %14 = arith.mulf %13, %8 : vector<392x128xf32>
    %15 = arith.addf %8, %14 : vector<392x128xf32>
    %cst_9 = arith.constant 0.797884583 : f32
    %16 = vector.broadcast %cst_9 : f32 to vector<392x128xf32>
    %17 = arith.mulf %16, %15 : vector<392x128xf32>
    %18 = math.tanh %17 : vector<392x128xf32>
    %cst_10 = arith.constant 1.000000e+00 : f32
    %19 = vector.broadcast %cst_10 : f32 to vector<392x128xf32>
    %20 = arith.addf %19, %18 : vector<392x128xf32>
    %21 = arith.mulf %10, %20 : vector<392x128xf32>
    %c0_11 = arith.constant 0 : index
    %c0_12 = arith.constant 0 : index
    %22 = vector.load %arg5[%c0_11, %c0_12] : memref<392x128xf32, #tpu.memory_space<vmem>>, vector<392x128xf32>
    tpu.vector_store %arg5[%c0_11, %c0_12], %21 {strides = array<i32>} : memref<392x128xf32, #tpu.memory_space<vmem>>, vector<392x128xf32>,
    return
  }
  func.func @transform_0(%arg0: i32) -> (i32, i32) {
    %c0_i32 = arith.constant 0 : i32
    %c0_i32_0 = arith.constant 0 : i32
    return %arg0, %c0_i32 : i32, i32
  }
  func.func @transform_1(%arg0: i32) -> (i32, i32) {
    %c0_i32 = arith.constant 0 : i32
    %c0_i32_0 = arith.constant 0 : i32
    %c0_i32_1 = arith.constant 0 : i32
    return %c0_i32, %c0_i32_0 : i32, i32
  }
  func.func @transform_2(%arg0: i32) -> (i32, i32) {
    %c0_i32 = arith.constant 0 : i32
    %c0_i32_0 = arith.constant 0 : i32
    %c0_i32_1 = arith.constant 0 : i32
    return %c0_i32, %c0_i32_0 : i32, i32
  }
  func.func @transform_3(%arg0: i32) -> (i32, i32) {
    %c0_i32 = arith.constant 0 : i32
    %c0_i32_0 = arith.constant 0 : i32
    %c0_i32_1 = arith.constant 0 : i32
    return %c0_i32, %c0_i32_0 : i32, i32
  }
  func.func @transform_4(%arg0: i32) -> (i32, i32) {
    %c0_i32 = arith.constant 0 : i32
    %c0_i32_0 = arith.constant 0 : i32
    return %arg0, %c0_i32 : i32, i32
  }
}

</mosaic_0001>

<llo_original>
// kernel: tpu_custom_call.1
$region0: #{tpu_custom_call.1}
  #allocation0 [shape = 'u32[]', space=smem, size = 0x4, offset = 0x4, fixed_abs, tag = 'smem constant byte address 0x4 - core index']
  #allocation1 [shape = 'u32[72,128]{1,0:T(1,128)}', space=vmem, size = 0x9000, scoped, tag = 'internal scratch']
  %s0 = inlined_call_operand.hbm [shape: f32[392,128], index: 0, kind: input, shape index: {}]
  %s1 = inlined_call_operand.hbm [shape: f32[128,128], index: 1, kind: input, shape index: {}]
  %s2 = inlined_call_operand.vmem [shape: f32[1,128], index: 2, kind: input, shape index: {}]
  %s3 = inlined_call_operand.vmem [shape: f32[1,128], index: 3, kind: input, shape index: {}]
  %s4 = inlined_call_operand.hbm [shape: f32[392,128], index: 4, kind: output, shape index: {}]
  %s5 = sld [smem:[#allocation0]]
  $region34: #{tpu_custom_call.1} parent=0
    _
  %s7 = ssub.s32 1, %s5
  %s8 = scalar_select 0, %s7, %s5
  $region1: #{tpu_custom_call.1} parent=0
    #allocation2 [shape = 'u8[200704]{0}', space=vmem, size = 0x31000, scoped, tag = 'input window, operand 0, single buffered']
    #allocation3 [shape = 's32[1]{0}', space=sflag, size = 0x4, scoped, tag = 'scoped memory for tpu_custom_call.1']
    #allocation4 [shape = 's32[1]{0}', space=sflag, size = 0x4, scoped, tag = 'scoped memory for tpu_custom_call.1']
    #allocation5 [shape = 'u8[65536]{0}', space=vmem, size = 0x10000, scoped, tag = 'input window, operand 1, single buffered']
    #allocation6 [shape = 's32[1]{0}', space=sflag, size = 0x4, scoped, tag = 'scoped memory for tpu_custom_call.1']
    #allocation7 [shape = 'u8[200704]{0}', space=vmem, size = 0x31000, scoped, tag = 'output window, operand 0, single buffered']
    %9 = vsyncpa [#allocation3], 0
    %10 = vsyncpa [#allocation6], 0
    %11 = vsyncpa [#allocation4], 0
    // Predicated region
    $region2: #{tpu_custom_call.1} parent=1 // pred_check
      _
    $region3: #{tpu_custom_call.1} parent=1 // pred_check_branch
      %13 = sbr.rel (0) target = $region5
    $region4: #{tpu_custom_call.1} parent=1 // pred_region
      %15 = vsyncadd [#allocation3], 0
      %s16 = sshll.u32 %s0, 4
      %s17 = int_to_ptr.hbm [resolvable:$true] %s16
      %s18 = sshll.u32 [#allocation2], 4
      %s19 = int_to_ptr.vmem [resolvable:$true] %s18
      %24 = dma.hbm_to_vmem [thread:$0]  %s17, 6272, %s19, [#allocation3], 128, 128, 8
    $region5: #{tpu_custom_call.1} parent=1 // pred_fallthru
      _
    // Predicated region
    $region6: #{tpu_custom_call.1} parent=1 // pred_check
      _
    $region7: #{tpu_custom_call.1} parent=1 // pred_check_branch
      %26 = sbr.rel (0) target = $region9
    $region8: #{tpu_custom_call.1} parent=1 // pred_region
      %28 = vsyncadd [#allocation6], 0
      %s29 = sshll.u32 %s1, 4
      %s30 = int_to_ptr.hbm [resolvable:$true] %s29
      %s31 = sshll.u32 [#allocation5], 4
      %s32 = int_to_ptr.vmem [resolvable:$true] %s31
      %37 = dma.hbm_to_vmem [thread:$0]  %s30, 2048, %s32, [#allocation6], 128, 128, 8
    $region9: #{tpu_custom_call.1} parent=1 // pred_fallthru
      _
    // Predicated region
    $region10: #{tpu_custom_call.1} parent=1 // pred_check
      _
    $region11: #{tpu_custom_call.1} parent=1 // pred_check_branch
      %39 = sbr.rel (0) target = $region13
    $region12: #{tpu_custom_call.1} parent=1 // pred_region
      _
    $region13: #{tpu_custom_call.1} parent=1 // pred_fallthru
      _
    // Predicated region
    $region14: #{tpu_custom_call.1} parent=1 // pred_check
      _
    $region15: #{tpu_custom_call.1} parent=1 // pred_check_branch
      %41 = sbr.rel (0) target = $region17
    $region16: #{tpu_custom_call.1} parent=1 // pred_region
      _
    $region17: #{tpu_custom_call.1} parent=1 // pred_fallthru
      _
    // Predicated region
    $region18: #{tpu_custom_call.1} parent=1 // pred_check
      _
    $region19: #{tpu_custom_call.1} parent=1 // pred_check_branch
      %43 = sbr.rel (0) target = $region21
    $region20: #{tpu_custom_call.1} parent=1 // pred_region
      %45 = dma.done [#allocation3], 6272
    $region21: #{tpu_custom_call.1} parent=1 // pred_fallthru
      _
    // Predicated region
    $region22: #{tpu_custom_call.1} parent=1 // pred_check
      _
    $region23: #{tpu_custom_call.1} parent=1 // pred_check_branch
      %47 = sbr.rel (0) target = $region25
    $region24: #{tpu_custom_call.1} parent=1 // pred_region
      %49 = dma.done [#allocation6], 2048
    $region25: #{tpu_custom_call.1} parent=1 // pred_fallthru
      _
    %v50 = vld [vmem:[#allocation2] sm:$0xff]
    %v51 = vld [vmem:[#allocation2 + $0x8] sm:$0xff]
    %v52 = vld [vmem:[#allocation2 + $0x10] sm:$0xff]
    %v53 = vld [vmem:[#allocation2 + $0x18] sm:$0xff]
    %v54 = vld [vmem:[#allocation2 + $0x20] sm:$0xff]
    %v55 = vld [vmem:[#allocation2 + $0x28] sm:$0xff]
    %v56 = vld [vmem:[#allocation2 + $0x30] sm:$0xff]
    %v57 = vld [vmem:[#allocation2 + $0x38] sm:$0xff]
    %v58 = vld [vmem:[#allocation2 + $0x40] sm:$0xff]
    %v59 = vld [vmem:[#allocation2 + $0x48] sm:$0xff]
    %v60 = vld [vmem:[#allocation2 + $0x50] sm:$0xff]
    %v61 = vld [vmem:[#allocation2 + $0x58] sm:$0xff]
    %v62 = vld [vmem:[#allocation2 + $0x60] sm:$0xff]
    %v63 = vld [vmem:[#allocation2 + $0x68] sm:$0xff]
    %v64 = vld [vmem:[#allocation2 + $0x70] sm:$0xff]
    %v65 = vld [vmem:[#allocation2 + $0x78] sm:$0xff]
    %v66 = vld [vmem:[#allocation2 + $0x80] sm:$0xff]
    %v67 = vld [vmem:[#allocation2 + $0x88] sm:$0xff]
    %v68 = vld [vmem:[#allocation2 + $0x90] sm:$0xff]
    %v69 = vld [vmem:[#allocation2 + $0x98] sm:$0xff]
    %v70 = vld [vmem:[#allocation2 + $0xa0] sm:$0xff]
    %v71 = vld [vmem:[#allocation2 + $0xa8] sm:$0xff]
    %v72 = vld [vmem:[#allocation2 + $0xb0] sm:$0xff]
    %v73 = vld [vmem:[#allocation2 + $0xb8] sm:$0xff]
    %v74 = vld [vmem:[#allocation2 + $0xc0] sm:$0xff]
    %v75 = vld [vmem:[#allocation2 + $0xc8] sm:$0xff]
    %v76 = vld [vmem:[#allocation2 + $0xd0] sm:$0xff]
    %v77 = vld [vmem:[#allocation2 + $0xd8] sm:$0xff]
    %v78 = vld [vmem:[#allocation2 + $0xe0] sm:$0xff]
    %v79 = vld [vmem:[#allocation2 + $0xe8] sm:$0xff]
    %v80 = vld [vmem:[#allocation2 + $0xf0] sm:$0xff]
    %v81 = vld [vmem:[#allocation2 + $0xf8] sm:$0xff]
    %v82 = vld [vmem:[#allocation2 + $0x100] sm:$0xff]
    %v83 = vld [vmem:[#allocation2 + $0x108] sm:$0xff]
    %v84 = vld [vmem:[#allocation2 + $0x110] sm:$0xff]
    %v85 = vld [vmem:[#allocation2 + $0x118] sm:$0xff]
    %v86 = vld [vmem:[#allocation2 + $0x120] sm:$0xff]
    %v87 = vld [vmem:[#allocation2 + $0x128] sm:$0xff]
    %v88 = vld [vmem:[#allocation2 + $0x130] sm:$0xff]
    %v89 = vld [vmem:[#allocation2 + $0x138] sm:$0xff]
    %v90 = vld [vmem:[#allocation2 + $0x140] sm:$0xff]
    %v91 = vld [vmem:[#allocation2 + $0x148] sm:$0xff]
    %v92 = vld [vmem:[#allocation2 + $0x150] sm:$0xff]
    %v93 = vld [vmem:[#allocation2 + $0x158] sm:$0xff]
    %v94 = vld [vmem:[#allocation2 + $0x160] sm:$0xff]
    %v95 = vld [vmem:[#allocation2 + $0x168] sm:$0xff]
    %v96 = vld [vmem:[#allocation2 + $0x170] sm:$0xff]
    %v97 = vld [vmem:[#allocation2 + $0x178] sm:$0xff]
    %v98 = vld [vmem:[#allocation2 + $0x180] sm:$0xff]
    %v99 = vld [vmem:[%s2] sm:$0x1]
    %v101 = vperm.slane %v99, 0
    %v103 = vsub.f32 %v50, %v101
    %v104 = vsub.f32 %v51, %v101
    %v105 = vsub.f32 %v52, %v101
    %v106 = vsub.f32 %v53, %v101
    %v107 = vsub.f32 %v54, %v101
    %v108 = vsub.f32 %v55, %v101
    %v109 = vsub.f32 %v56, %v101
    %v110 = vsub.f32 %v57, %v101
    %v111 = vsub.f32 %v58, %v101
    %v112 = vsub.f32 %v59, %v101
    %v113 = vsub.f32 %v60, %v101
    %v114 = vsub.f32 %v61, %v101
    %v115 = vsub.f32 %v62, %v101
    %v116 = vsub.f32 %v63, %v101
    %v117 = vsub.f32 %v64, %v101
    %v118 = vsub.f32 %v65, %v101
    %v119 = vsub.f32 %v66, %v101
    %v120 = vsub.f32 %v67, %v101
    %v121 = vsub.f32 %v68, %v101
    %v122 = vsub.f32 %v69, %v101
    %v123 = vsub.f32 %v70, %v101
    %v124 = vsub.f32 %v71, %v101
    %v125 = vsub.f32 %v72, %v101
    %v126 = vsub.f32 %v73, %v101
    %v127 = vsub.f32 %v74, %v101
    %v128 = vsub.f32 %v75, %v101
    %v129 = vsub.f32 %v76, %v101
    %v130 = vsub.f32 %v77, %v101
    %v131 = vsub.f32 %v78, %v101
    %v132 = vsub.f32 %v79, %v101
    %v133 = vsub.f32 %v80, %v101
    %v134 = vsub.f32 %v81, %v101
    %v135 = vsub.f32 %v82, %v101
    %v136 = vsub.f32 %v83, %v101
    %v137 = vsub.f32 %v84, %v101
    %v138 = vsub.f32 %v85, %v101
    %v139 = vsub.f32 %v86, %v101
    %v140 = vsub.f32 %v87, %v101
    %v141 = vsub.f32 %v88, %v101
    %v142 = vsub.f32 %v89, %v101
    %v143 = vsub.f32 %v90, %v101
    %v144 = vsub.f32 %v91, %v101
    %v145 = vsub.f32 %v92, %v101
    %v146 = vsub.f32 %v93, %v101
    %v147 = vsub.f32 %v94, %v101
    %v148 = vsub.f32 %v95, %v101
    %v149 = vsub.f32 %v96, %v101
    %v150 = vsub.f32 %v97, %v101
    %v151 = vsub.f32 %v98, %v101
    %v152 = vld [vmem:[%s3] sm:$0x1]
    %v154 = vperm.slane %v152, 0
    %v156 = vmul.f32 %v103, %v154
    %v157 = vmul.f32 %v104, %v154
    %v158 = vmul.f32 %v105, %v154
    %v159 = vmul.f32 %v106, %v154
    %v160 = vmul.f32 %v107, %v154
    %v161 = vmul.f32 %v108, %v154
    %v162 = vmul.f32 %v109, %v154
    %v163 = vmul.f32 %v110, %v154
    %v164 = vmul.f32 %v111, %v154
    %v165 = vmul.f32 %v112, %v154
    %v166 = vmul.f32 %v113, %v154
    %v167 = vmul.f32 %v114, %v154
    %v168 = vmul.f32 %v115, %v154
    %v169 = vmul.f32 %v116, %v154
    %v170 = vmul.f32 %v117, %v154
    %v171 = vmul.f32 %v118, %v154
    %v172 = vmul.f32 %v119, %v154
    %v173 = vmul.f32 %v120, %v154
    %v174 = vmul.f32 %v121, %v154
    %v175 = vmul.f32 %v122, %v154
    %v176 = vmul.f32 %v123, %v154
    %v177 = vmul.f32 %v124, %v154
    %v178 = vmul.f32 %v125, %v154
    %v179 = vmul.f32 %v126, %v154
    %v180 = vmul.f32 %v127, %v154
    %v181 = vmul.f32 %v128, %v154
    %v182 = vmul.f32 %v129, %v154
    %v183 = vmul.f32 %v130, %v154
    %v184 = vmul.f32 %v131, %v154
    %v185 = vmul.f32 %v132, %v154
    %v186 = vmul.f32 %v133, %v154
    %v187 = vmul.f32 %v134, %v154
    %v188 = vmul.f32 %v135, %v154
    %v189 = vmul.f32 %v136, %v154
    %v190 = vmul.f32 %v137, %v154
    %v191 = vmul.f32 %v138, %v154
    %v192 = vmul.f32 %v139, %v154
    %v193 = vmul.f32 %v140, %v154
    %v194 = vmul.f32 %v141, %v154
    %v195 = vmul.f32 %v142, %v154
    %v196 = vmul.f32 %v143, %v154
    %v197 = vmul.f32 %v144, %v154
    %v198 = vmul.f32 %v145, %v154
    %v199 = vmul.f32 %v146, %v154
    %v200 = vmul.f32 %v147, %v154
    %v201 = vmul.f32 %v148, %v154
    %v202 = vmul.f32 %v149, %v154
    %v203 = vmul.f32 %v150, %v154
    %v204 = vmul.f32 %v151, %v154
    %v205 = vld [vmem:[#allocation5] sm:$0xff]
    %v206 = vld [vmem:[#allocation5 + $0x8] sm:$0xff]
    %v207 = vld [vmem:[#allocation5 + $0x10] sm:$0xff]
    %v208 = vld [vmem:[#allocation5 + $0x18] sm:$0xff]
    %v209 = vld [vmem:[#allocation5 + $0x20] sm:$0xff]
    %v210 = vld [vmem:[#allocation5 + $0x28] sm:$0xff]
    %v211 = vld [vmem:[#allocation5 + $0x30] sm:$0xff]
    %v212 = vld [vmem:[#allocation5 + $0x38] sm:$0xff]
    %v213 = vld [vmem:[#allocation5 + $0x40] sm:$0xff]
    %v214 = vld [vmem:[#allocation5 + $0x48] sm:$0xff]
    %v215 = vld [vmem:[#allocation5 + $0x50] sm:$0xff]
    %v216 = vld [vmem:[#allocation5 + $0x58] sm:$0xff]
    %v217 = vld [vmem:[#allocation5 + $0x60] sm:$0xff]
    %v218 = vld [vmem:[#allocation5 + $0x68] sm:$0xff]
    %v219 = vld [vmem:[#allocation5 + $0x70] sm:$0xff]
    %v220 = vld [vmem:[#allocation5 + $0x78] sm:$0xff]
    %221 = vmatpush.msra.mxu0 %v220
    %222 = vmatpush.msra.mxu0 %v219
    %223 = vmatpush.msra.mxu0 %v218
    %224 = vmatpush.msra.mxu0 %v217
    %225 = vmatpush.msra.mxu0 %v216
    %226 = vmatpush.msra.mxu0 %v215
    %227 = vmatpush.msra.mxu0 %v214
    %228 = vmatpush.msra.mxu0 %v213
    %229 = vmatpush.msra.mxu0 %v212
    %230 = vmatpush.msra.mxu0 %v211
    %231 = vmatpush.msra.mxu0 %v210
    %232 = vmatpush.msra.mxu0 %v209
    %233 = vmatpush.msra.mxu0 %v208
    %234 = vmatpush.msra.mxu0 %v207
    %235 = vmatpush.msra.mxu0 %v206
    %236 = vmatpush.msra.mxu0 %v205
    %237 = vmatmul.f32.gmra.mxu0 %v156
    %v238 = vpop.f32.mrf.mxu0
    %v239 = vadd.f32 0.0, %v238
    %240 = vmatmul.f32.gmra.mxu0 %v157
    %v241 = vpop.f32.mrf.mxu0
    %v242 = vadd.f32 0.0, %v241
    %243 = vmatmul.f32.gmra.mxu0 %v158
    %v244 = vpop.f32.mrf.mxu0
    %v245 = vadd.f32 0.0, %v244
    %246 = vmatmul.f32.gmra.mxu0 %v159
    %v247 = vpop.f32.mrf.mxu0
    %v248 = vadd.f32 0.0, %v247
    %249 = vmatmul.f32.gmra.mxu0 %v160
    %v250 = vpop.f32.mrf.mxu0
    %v251 = vadd.f32 0.0, %v250
    %252 = vmatmul.f32.gmra.mxu0 %v161
    %v253 = vpop.f32.mrf.mxu0
    %v254 = vadd.f32 0.0, %v253
    %255 = vmatmul.f32.gmra.mxu0 %v162
    %v256 = vpop.f32.mrf.mxu0
    %v257 = vadd.f32 0.0, %v256
    %258 = vmatmul.f32.gmra.mxu0 %v163
    %v259 = vpop.f32.mrf.mxu0
    %v260 = vadd.f32 0.0, %v259
    %261 = vmatmul.f32.gmra.mxu0 %v164
    %v262 = vpop.f32.mrf.mxu0
    %v263 = vadd.f32 0.0, %v262
    %264 = vmatmul.f32.gmra.mxu0 %v165
    %v265 = vpop.f32.mrf.mxu0
    %v266 = vadd.f32 0.0, %v265
    %267 = vmatmul.f32.gmra.mxu0 %v166
    %v268 = vpop.f32.mrf.mxu0
    %v269 = vadd.f32 0.0, %v268
    %270 = vmatmul.f32.gmra.mxu0 %v167
    %v271 = vpop.f32.mrf.mxu0
    %v272 = vadd.f32 0.0, %v271
    %273 = vmatmul.f32.gmra.mxu0 %v168
    %v274 = vpop.f32.mrf.mxu0
    %v275 = vadd.f32 0.0, %v274
    %276 = vmatmul.f32.gmra.mxu0 %v169
    %v277 = vpop.f32.mrf.mxu0
    %v278 = vadd.f32 0.0, %v277
    %279 = vmatmul.f32.gmra.mxu0 %v170
    %v280 = vpop.f32.mrf.mxu0
    %v281 = vadd.f32 0.0, %v280
    %282 = vmatmul.f32.gmra.mxu0 %v171
    %v283 = vpop.f32.mrf.mxu0
    %v284 = vadd.f32 0.0, %v283
    %285 = vmatmul.f32.gmra.mxu0 %v172
    %v286 = vpop.f32.mrf.mxu0
    %v287 = vadd.f32 0.0, %v286
    %288 = vmatmul.f32.gmra.mxu0 %v173
    %v289 = vpop.f32.mrf.mxu0
    %v290 = vadd.f32 0.0, %v289
    %291 = vmatmul.f32.gmra.mxu0 %v174
    %v292 = vpop.f32.mrf.mxu0
    %v293 = vadd.f32 0.0, %v292
    %294 = vmatmul.f32.gmra.mxu0 %v175
    %v295 = vpop.f32.mrf.mxu0
    %v296 = vadd.f32 0.0, %v295
    %297 = vmatmul.f32.gmra.mxu0 %v176
    %v298 = vpop.f32.mrf.mxu0
    %v299 = vadd.f32 0.0, %v298
    %300 = vmatmul.f32.gmra.mxu0 %v177
    %v301 = vpop.f32.mrf.mxu0
    %v302 = vadd.f32 0.0, %v301
    %303 = vmatmul.f32.gmra.mxu0 %v178
    %v304 = vpop.f32.mrf.mxu0
    %v305 = vadd.f32 0.0, %v304
    %306 = vmatmul.f32.gmra.mxu0 %v179
    %v307 = vpop.f32.mrf.mxu0
    %v308 = vadd.f32 0.0, %v307
    %309 = vmatmul.f32.gmra.mxu0 %v180
    %v310 = vpop.f32.mrf.mxu0
    %v311 = vadd.f32 0.0, %v310
    %312 = vmatmul.f32.gmra.mxu0 %v181
    %v313 = vpop.f32.mrf.mxu0
    %v314 = vadd.f32 0.0, %v313
    %315 = vmatmul.f32.gmra.mxu0 %v182
    %v316 = vpop.f32.mrf.mxu0
    %v317 = vadd.f32 0.0, %v316
    %318 = vmatmul.f32.gmra.mxu0 %v183
    %v319 = vpop.f32.mrf.mxu0
    %v320 = vadd.f32 0.0, %v319
    %321 = vmatmul.f32.gmra.mxu0 %v184
    %v322 = vpop.f32.mrf.mxu0
    %v323 = vadd.f32 0.0, %v322
    %324 = vmatmul.f32.gmra.mxu0 %v185
    %v325 = vpop.f32.mrf.mxu0
    %v326 = vadd.f32 0.0, %v325
    %327 = vmatmul.f32.gmra.mxu0 %v186
    %v328 = vpop.f32.mrf.mxu0
    %v329 = vadd.f32 0.0, %v328
    %330 = vmatmul.f32.gmra.mxu0 %v187
    %v331 = vpop.f32.mrf.mxu0
    %v332 = vadd.f32 0.0, %v331
    %333 = vmatmul.f32.gmra.mxu0 %v188
    %v334 = vpop.f32.mrf.mxu0
    %v335 = vadd.f32 0.0, %v334
    %336 = vmatmul.f32.gmra.mxu0 %v189
    %v337 = vpop.f32.mrf.mxu0
    %v338 = vadd.f32 0.0, %v337
    %339 = vmatmul.f32.gmra.mxu0 %v190
    %v340 = vpop.f32.mrf.mxu0
    %v341 = vadd.f32 0.0, %v340
    %342 = vmatmul.f32.gmra.mxu0 %v191
    %v343 = vpop.f32.mrf.mxu0
    %v344 = vadd.f32 0.0, %v343
    %345 = vmatmul.f32.gmra.mxu0 %v192
    %v346 = vpop.f32.mrf.mxu0
    %v347 = vadd.f32 0.0, %v346
    %348 = vmatmul.f32.gmra.mxu0 %v193
    %v349 = vpop.f32.mrf.mxu0
    %v350 = vadd.f32 0.0, %v349
    %351 = vmatmul.f32.gmra.mxu0 %v194
    %v352 = vpop.f32.mrf.mxu0
    %v353 = vadd.f32 0.0, %v352
    %354 = vmatmul.f32.gmra.mxu0 %v195
    %v355 = vpop.f32.mrf.mxu0
    %v356 = vadd.f32 0.0, %v355
    %357 = vmatmul.f32.gmra.mxu0 %v196
    %v358 = vpop.f32.mrf.mxu0
    %v359 = vadd.f32 0.0, %v358
    %360 = vmatmul.f32.gmra.mxu0 %v197
    %v361 = vpop.f32.mrf.mxu0
    %v362 = vadd.f32 0.0, %v361
    %363 = vmatmul.f32.gmra.mxu0 %v198
    %v364 = vpop.f32.mrf.mxu0
    %v365 = vadd.f32 0.0, %v364
    %366 = vmatmul.f32.gmra.mxu0 %v199
    %v367 = vpop.f32.mrf.mxu0
    %v368 = vadd.f32 0.0, %v367
    %369 = vmatmul.f32.gmra.mxu0 %v200
    %v370 = vpop.f32.mrf.mxu0
    %v371 = vadd.f32 0.0, %v370
    %372 = vmatmul.f32.gmra.mxu0 %v201
    %v373 = vpop.f32.mrf.mxu0
    %v374 = vadd.f32 0.0, %v373
    %375 = vmatmul.f32.gmra.mxu0 %v202
    %v376 = vpop.f32.mrf.mxu0
    %v377 = vadd.f32 0.0, %v376
    %378 = vmatmul.f32.gmra.mxu0 %v203
    %v379 = vpop.f32.mrf.mxu0
    %v380 = vadd.f32 0.0, %v379
    %381 = vmatmul.f32.gmra.mxu0 %v204
    %v382 = vpop.f32.mrf.mxu0
    %v383 = vadd.f32 0.0, %v382
    %384 = vdwg.mxu0
    %v385 = vmul.f32 %v239, 0.5
    %v386 = vmul.f32 %v242, 0.5
    %v387 = vmul.f32 %v245, 0.5
    %v388 = vmul.f32 %v248, 0.5
    %v389 = vmul.f32 %v251, 0.5
    %v390 = vmul.f32 %v254, 0.5
    %v391 = vmul.f32 %v257, 0.5
    %v392 = vmul.f32 %v260, 0.5
    %v393 = vmul.f32 %v263, 0.5
    %v394 = vmul.f32 %v266, 0.5
    %v395 = vmul.f32 %v269, 0.5
    %v396 = vmul.f32 %v272, 0.5
    %v397 = vmul.f32 %v275, 0.5
    %v398 = vmul.f32 %v278, 0.5
    %v399 = vmul.f32 %v281, 0.5
    %v400 = vmul.f32 %v284, 0.5
    %v401 = vmul.f32 %v287, 0.5
    %v402 = vmul.f32 %v290, 0.5
    %v403 = vmul.f32 %v293, 0.5
    %v404 = vmul.f32 %v296, 0.5
    %v405 = vmul.f32 %v299, 0.5
    %v406 = vmul.f32 %v302, 0.5
    %v407 = vmul.f32 %v305, 0.5
    %v408 = vmul.f32 %v308, 0.5
    %v409 = vmul.f32 %v311, 0.5
    %v410 = vmul.f32 %v314, 0.5
    %v411 = vmul.f32 %v317, 0.5
    %v412 = vmul.f32 %v320, 0.5
    %v413 = vmul.f32 %v323, 0.5
    %v414 = vmul.f32 %v326, 0.5
    %v415 = vmul.f32 %v329, 0.5
    %v416 = vmul.f32 %v332, 0.5
    %v417 = vmul.f32 %v335, 0.5
    %v418 = vmul.f32 %v338, 0.5
    %v419 = vmul.f32 %v341, 0.5
    %v420 = vmul.f32 %v344, 0.5
    %v421 = vmul.f32 %v347, 0.5
    %v422 = vmul.f32 %v350, 0.5
    %v423 = vmul.f32 %v353, 0.5
    %v424 = vmul.f32 %v356, 0.5
    %v425 = vmul.f32 %v359, 0.5
    %v426 = vmul.f32 %v362, 0.5
    %v427 = vmul.f32 %v365, 0.5
    %v428 = vmul.f32 %v368, 0.5
    %v429 = vmul.f32 %v371, 0.5
    %v430 = vmul.f32 %v374, 0.5
    %v431 = vmul.f32 %v377, 0.5
    %v432 = vmul.f32 %v380, 0.5
    %v433 = vmul.f32 %v383, 0.5
    %v434 = vmul.f32 %v239, 0.044715
    %v435 = vmul.f32 %v242, 0.044715
    %v436 = vmul.f32 %v245, 0.044715
    %v437 = vmul.f32 %v248, 0.044715
    %v438 = vmul.f32 %v251, 0.044715
    %v439 = vmul.f32 %v254, 0.044715
    %v440 = vmul.f32 %v257, 0.044715
    %v441 = vmul.f32 %v260, 0.044715
    %v442 = vmul.f32 %v263, 0.044715
    %v443 = vmul.f32 %v266, 0.044715
    %v444 = vmul.f32 %v269, 0.044715
    %v445 = vmul.f32 %v272, 0.044715
    %v446 = vmul.f32 %v275, 0.044715
    %v447 = vmul.f32 %v278, 0.044715
    %v448 = vmul.f32 %v281, 0.044715
    %v449 = vmul.f32 %v284, 0.044715
    %v450 = vmul.f32 %v287, 0.044715
    %v451 = vmul.f32 %v290, 0.044715
    %v452 = vmul.f32 %v293, 0.044715
    %v453 = vmul.f32 %v296, 0.044715
    %v454 = vmul.f32 %v299, 0.044715
    %v455 = vmul.f32 %v302, 0.044715
    %v456 = vmul.f32 %v305, 0.044715
    %v457 = vmul.f32 %v308, 0.044715
    %v458 = vmul.f32 %v311, 0.044715
    %v459 = vmul.f32 %v314, 0.044715
    %v460 = vmul.f32 %v317, 0.044715
    %v461 = vmul.f32 %v320, 0.044715
    %v462 = vmul.f32 %v323, 0.044715
    %v463 = vmul.f32 %v326, 0.044715
    %v464 = vmul.f32 %v329, 0.044715
    %v465 = vmul.f32 %v332, 0.044715
    %v466 = vmul.f32 %v335, 0.044715
    %v467 = vmul.f32 %v338, 0.044715
    %v468 = vmul.f32 %v341, 0.044715
    %v469 = vmul.f32 %v344, 0.044715
    %v470 = vmul.f32 %v347, 0.044715
    %v471 = vmul.f32 %v350, 0.044715
    %v472 = vmul.f32 %v353, 0.044715
    %v473 = vmul.f32 %v356, 0.044715
    %v474 = vmul.f32 %v359, 0.044715
    %v475 = vmul.f32 %v362, 0.044715
    %v476 = vmul.f32 %v365, 0.044715
    %v477 = vmul.f32 %v368, 0.044715
    %v478 = vmul.f32 %v371, 0.044715
    %v479 = vmul.f32 %v374, 0.044715
    %v480 = vmul.f32 %v377, 0.044715
    %v481 = vmul.f32 %v380, 0.044715
    %v482 = vmul.f32 %v383, 0.044715
    %v483 = vmul.f32 %v434, %v239
    %v484 = vmul.f32 %v435, %v242
    %v485 = vmul.f32 %v436, %v245
    %v486 = vmul.f32 %v437, %v248
    %v487 = vmul.f32 %v438, %v251
    %v488 = vmul.f32 %v439, %v254
    %v489 = vmul.f32 %v440, %v257
    %v490 = vmul.f32 %v441, %v260
    %v491 = vmul.f32 %v442, %v263
    %v492 = vmul.f32 %v443, %v266
    %v493 = vmul.f32 %v444, %v269
    %v494 = vmul.f32 %v445, %v272
    %v495 = vmul.f32 %v446, %v275
    %v496 = vmul.f32 %v447, %v278
    %v497 = vmul.f32 %v448, %v281
    %v498 = vmul.f32 %v449, %v284
    %v499 = vmul.f32 %v450, %v287
    %v500 = vmul.f32 %v451, %v290
    %v501 = vmul.f32 %v452, %v293
    %v502 = vmul.f32 %v453, %v296
    %v503 = vmul.f32 %v454, %v299
    %v504 = vmul.f32 %v455, %v302
    %v505 = vmul.f32 %v456, %v305
    %v506 = vmul.f32 %v457, %v308
    %v507 = vmul.f32 %v458, %v311
    %v508 = vmul.f32 %v459, %v314
    %v509 = vmul.f32 %v460, %v317
    %v510 = vmul.f32 %v461, %v320
    %v511 = vmul.f32 %v462, %v323
    %v512 = vmul.f32 %v463, %v326
    %v513 = vmul.f32 %v464, %v329
    %v514 = vmul.f32 %v465, %v332
    %v515 = vmul.f32 %v466, %v335
    %v516 = vmul.f32 %v467, %v338
    %v517 = vmul.f32 %v468, %v341
    %v518 = vmul.f32 %v469, %v344
    %v519 = vmul.f32 %v470, %v347
    %v520 = vmul.f32 %v471, %v350
    %v521 = vmul.f32 %v472, %v353
    %v522 = vmul.f32 %v473, %v356
    %v523 = vmul.f32 %v474, %v359
    %v524 = vmul.f32 %v475, %v362
    %v525 = vmul.f32 %v476, %v365
    %v526 = vmul.f32 %v477, %v368
    %v527 = vmul.f32 %v478, %v371
    %v528 = vmul.f32 %v479, %v374
    %v529 = vmul.f32 %v480, %v377
    %v530 = vmul.f32 %v481, %v380
    %v531 = vmul.f32 %v482, %v383
    %v532 = vmul.f32 %v483, %v239
    %v533 = vmul.f32 %v484, %v242
    %v534 = vmul.f32 %v485, %v245
    %v535 = vmul.f32 %v486, %v248
    %v536 = vmul.f32 %v487, %v251
    %v537 = vmul.f32 %v488, %v254
    %v538 = vmul.f32 %v489, %v257
    %v539 = vmul.f32 %v490, %v260
    %v540 = vmul.f32 %v491, %v263
    %v541 = vmul.f32 %v492, %v266
    %v542 = vmul.f32 %v493, %v269
    %v543 = vmul.f32 %v494, %v272
    %v544 = vmul.f32 %v495, %v275
    %v545 = vmul.f32 %v496, %v278
    %v546 = vmul.f32 %v497, %v281
    %v547 = vmul.f32 %v498, %v284
    %v548 = vmul.f32 %v499, %v287
    %v549 = vmul.f32 %v500, %v290
    %v550 = vmul.f32 %v501, %v293
    %v551 = vmul.f32 %v502, %v296
    %v552 = vmul.f32 %v503, %v299
    %v553 = vmul.f32 %v504, %v302
    %v554 = vmul.f32 %v505, %v305
    %v555 = vmul.f32 %v506, %v308
    %v556 = vmul.f32 %v507, %v311
    %v557 = vmul.f32 %v508, %v314
    %v558 = vmul.f32 %v509, %v317
    %v559 = vmul.f32 %v510, %v320
    %v560 = vmul.f32 %v511, %v323
    %v561 = vmul.f32 %v512, %v326
    %v562 = vmul.f32 %v513, %v329
    %v563 = vmul.f32 %v514, %v332
    %v564 = vmul.f32 %v515, %v335
    %v565 = vmul.f32 %v516, %v338
    %v566 = vmul.f32 %v517, %v341
    %v567 = vmul.f32 %v518, %v344
    %v568 = vmul.f32 %v519, %v347
    %v569 = vmul.f32 %v520, %v350
    %v570 = vmul.f32 %v521, %v353
    %v571 = vmul.f32 %v522, %v356
    %v572 = vmul.f32 %v523, %v359
    %v573 = vmul.f32 %v524, %v362
    %v574 = vmul.f32 %v525, %v365
    %v575 = vmul.f32 %v526, %v368
    %v576 = vmul.f32 %v527, %v371
    %v577 = vmul.f32 %v528, %v374
    %v578 = vmul.f32 %v529, %v377
    %v579 = vmul.f32 %v530, %v380
    %v580 = vmul.f32 %v531, %v383
    %v581 = vadd.f32 %v239, %v532
    %v582 = vadd.f32 %v242, %v533
    %v583 = vadd.f32 %v245, %v534
    %v584 = vadd.f32 %v248, %v535
    %v585 = vadd.f32 %v251, %v536
    %v586 = vadd.f32 %v254, %v537
    %v587 = vadd.f32 %v257, %v538
    %v588 = vadd.f32 %v260, %v539
    %v589 = vadd.f32 %v263, %v540
    %v590 = vadd.f32 %v266, %v541
    %v591 = vadd.f32 %v269, %v542
    %v592 = vadd.f32 %v272, %v543
    %v593 = vadd.f32 %v275, %v544
    %v594 = vadd.f32 %v278, %v545
    %v595 = vadd.f32 %v281, %v546
    %v596 = vadd.f32 %v284, %v547
    %v597 = vadd.f32 %v287, %v548
    %v598 = vadd.f32 %v290, %v549
    %v599 = vadd.f32 %v293, %v550
    %v600 = vadd.f32 %v296, %v551
    %v601 = vadd.f32 %v299, %v552
    %v602 = vadd.f32 %v302, %v553
    %v603 = vadd.f32 %v305, %v554
    %v604 = vadd.f32 %v308, %v555
    %v605 = vadd.f32 %v311, %v556
    %v606 = vadd.f32 %v314, %v557
    %v607 = vadd.f32 %v317, %v558
    %v608 = vadd.f32 %v320, %v559
    %v609 = vadd.f32 %v323, %v560
    %v610 = vadd.f32 %v326, %v561
    %v611 = vadd.f32 %v329, %v562
    %v612 = vadd.f32 %v332, %v563
    %v613 = vadd.f32 %v335, %v564
    %v614 = vadd.f32 %v338, %v565
    %v615 = vadd.f32 %v341, %v566
    %v616 = vadd.f32 %v344, %v567
    %v617 = vadd.f32 %v347, %v568
    %v618 = vadd.f32 %v350, %v569
    %v619 = vadd.f32 %v353, %v570
    %v620 = vadd.f32 %v356, %v571
    %v621 = vadd.f32 %v359, %v572
    %v622 = vadd.f32 %v362, %v573
    %v623 = vadd.f32 %v365, %v574
    %v624 = vadd.f32 %v368, %v575
    %v625 = vadd.f32 %v371, %v576
    %v626 = vadd.f32 %v374, %v577
    %v627 = vadd.f32 %v377, %v578
    %v628 = vadd.f32 %v380, %v579
    %v629 = vadd.f32 %v383, %v580
    %v630 = vmul.f32 %v581, 0.7978846
    %v631 = vmul.f32 %v582, 0.7978846
    %v632 = vmul.f32 %v583, 0.7978846
    %v633 = vmul.f32 %v584, 0.7978846
    %v634 = vmul.f32 %v585, 0.7978846
    %v635 = vmul.f32 %v586, 0.7978846
    %v636 = vmul.f32 %v587, 0.7978846
    %v637 = vmul.f32 %v588, 0.7978846
    %v638 = vmul.f32 %v589, 0.7978846
    %v639 = vmul.f32 %v590, 0.7978846
    %v640 = vmul.f32 %v591, 0.7978846
    %v641 = vmul.f32 %v592, 0.7978846
    %v642 = vmul.f32 %v593, 0.7978846
    %v643 = vmul.f32 %v594, 0.7978846
    %v644 = vmul.f32 %v595, 0.7978846
    %v645 = vmul.f32 %v596, 0.7978846
    %v646 = vmul.f32 %v597, 0.7978846
    %v647 = vmul.f32 %v598, 0.7978846
    %v648 = vmul.f32 %v599, 0.7978846
    %v649 = vmul.f32 %v600, 0.7978846
    %v650 = vmul.f32 %v601, 0.7978846
    %v651 = vmul.f32 %v602, 0.7978846
    %v652 = vmul.f32 %v603, 0.7978846
    %v653 = vmul.f32 %v604, 0.7978846
    %v654 = vmul.f32 %v605, 0.7978846
    %v655 = vmul.f32 %v606, 0.7978846
    %v656 = vmul.f32 %v607, 0.7978846
    %v657 = vmul.f32 %v608, 0.7978846
    %v658 = vmul.f32 %v609, 0.7978846
    %v659 = vmul.f32 %v610, 0.7978846
    %v660 = vmul.f32 %v611, 0.7978846
    %v661 = vmul.f32 %v612, 0.7978846
    %v662 = vmul.f32 %v613, 0.7978846
    %v663 = vmul.f32 %v614, 0.7978846
    %v664 = vmul.f32 %v615, 0.7978846
    %v665 = vmul.f32 %v616, 0.7978846
    %v666 = vmul.f32 %v617, 0.7978846
    %v667 = vmul.f32 %v618, 0.7978846
    %v668 = vmul.f32 %v619, 0.7978846
    %v669 = vmul.f32 %v620, 0.7978846
    %v670 = vmul.f32 %v621, 0.7978846
    %v671 = vmul.f32 %v622, 0.7978846
    %v672 = vmul.f32 %v623, 0.7978846
    %v673 = vmul.f32 %v624, 0.7978846
    %v674 = vmul.f32 %v625, 0.7978846
    %v675 = vmul.f32 %v626, 0.7978846
    %v676 = vmul.f32 %v627, 0.7978846
    %v677 = vmul.f32 %v628, 0.7978846
    %v678 = vmul.f32 %v629, 0.7978846
    %v679 = vtanh.pop %v630
    %v680 = vtanh.pop %v631
    %v681 = vtanh.pop %v632
    %v682 = vtanh.pop %v633
    %v683 = vtanh.pop %v634
    %v684 = vtanh.pop %v635
    %v685 = vtanh.pop %v636
    %v686 = vtanh.pop %v637
    %v687 = vtanh.pop %v638
    %v688 = vtanh.pop %v639
    %v689 = vtanh.pop %v640
    %v690 = vtanh.pop %v641
    %v691 = vtanh.pop %v642
    %v692 = vtanh.pop %v643
    %v693 = vtanh.pop %v644
    %v694 = vtanh.pop %v645
    %v695 = vtanh.pop %v646
    %v696 = vtanh.pop %v647
    %v697 = vtanh.pop %v648
    %v698 = vtanh.pop %v649
    %v699 = vtanh.pop %v650
    %v700 = vtanh.pop %v651
    %v701 = vtanh.pop %v652
    %v702 = vtanh.pop %v653
    %v703 = vtanh.pop %v654
    %v704 = vtanh.pop %v655
    %v705 = vtanh.pop %v656
    %v706 = vtanh.pop %v657
    %v707 = vtanh.pop %v658
    %v708 = vtanh.pop %v659
    %v709 = vtanh.pop %v660
    %v710 = vtanh.pop %v661
    %v711 = vtanh.pop %v662
    %v712 = vtanh.pop %v663
    %v713 = vtanh.pop %v664
    %v714 = vtanh.pop %v665
    %v715 = vtanh.pop %v666
    %v716 = vtanh.pop %v667
    %v717 = vtanh.pop %v668
    %v718 = vtanh.pop %v669
    %v719 = vtanh.pop %v670
    %v720 = vtanh.pop %v671
    %v721 = vtanh.pop %v672
    %v722 = vtanh.pop %v673
    %v723 = vtanh.pop %v674
    %v724 = vtanh.pop %v675
    %v725 = vtanh.pop %v676
    %v726 = vtanh.pop %v677
    %v727 = vtanh.pop %v678
    %v728 = vadd.f32 %v679, 1.0
    %v729 = vadd.f32 %v680, 1.0
    %v730 = vadd.f32 %v681, 1.0
    %v731 = vadd.f32 %v682, 1.0
    %v732 = vadd.f32 %v683, 1.0
    %v733 = vadd.f32 %v684, 1.0
    %v734 = vadd.f32 %v685, 1.0
    %v735 = vadd.f32 %v686, 1.0
    %v736 = vadd.f32 %v687, 1.0
    %v737 = vadd.f32 %v688, 1.0
    %v738 = vadd.f32 %v689, 1.0
    %v739 = vadd.f32 %v690, 1.0
    %v740 = vadd.f32 %v691, 1.0
    %v741 = vadd.f32 %v692, 1.0
    %v742 = vadd.f32 %v693, 1.0
    %v743 = vadd.f32 %v694, 1.0
    %v744 = vadd.f32 %v695, 1.0
    %v745 = vadd.f32 %v696, 1.0
    %v746 = vadd.f32 %v697, 1.0
    %v747 = vadd.f32 %v698, 1.0
    %v748 = vadd.f32 %v699, 1.0
    %v749 = vadd.f32 %v700, 1.0
    %v750 = vadd.f32 %v701, 1.0
    %v751 = vadd.f32 %v702, 1.0
    %v752 = vadd.f32 %v703, 1.0
    %v753 = vadd.f32 %v704, 1.0
    %v754 = vadd.f32 %v705, 1.0
    %v755 = vadd.f32 %v706, 1.0
    %v756 = vadd.f32 %v707, 1.0
    %v757 = vadd.f32 %v708, 1.0
    %v758 = vadd.f32 %v709, 1.0
    %v759 = vadd.f32 %v710, 1.0
    %v760 = vadd.f32 %v711, 1.0
    %v761 = vadd.f32 %v712, 1.0
    %v762 = vadd.f32 %v713, 1.0
    %v763 = vadd.f32 %v714, 1.0
    %v764 = vadd.f32 %v715, 1.0
    %v765 = vadd.f32 %v716, 1.0
    %v766 = vadd.f32 %v717, 1.0
    %v767 = vadd.f32 %v718, 1.0
    %v768 = vadd.f32 %v719, 1.0
    %v769 = vadd.f32 %v720, 1.0
    %v770 = vadd.f32 %v721, 1.0
    %v771 = vadd.f32 %v722, 1.0
    %v772 = vadd.f32 %v723, 1.0
    %v773 = vadd.f32 %v724, 1.0
    %v774 = vadd.f32 %v725, 1.0
    %v775 = vadd.f32 %v726, 1.0
    %v776 = vadd.f32 %v727, 1.0
    %v777 = vmul.f32 %v385, %v728
    %v778 = vmul.f32 %v386, %v729
    %v779 = vmul.f32 %v387, %v730
    %v780 = vmul.f32 %v388, %v731
    %v781 = vmul.f32 %v389, %v732
    %v782 = vmul.f32 %v390, %v733
    %v783 = vmul.f32 %v391, %v734
    %v784 = vmul.f32 %v392, %v735
    %v785 = vmul.f32 %v393, %v736
    %v786 = vmul.f32 %v394, %v737
    %v787 = vmul.f32 %v395, %v738
    %v788 = vmul.f32 %v396, %v739
    %v789 = vmul.f32 %v397, %v740
    %v790 = vmul.f32 %v398, %v741
    %v791 = vmul.f32 %v399, %v742
    %v792 = vmul.f32 %v400, %v743
    %v793 = vmul.f32 %v401, %v744
    %v794 = vmul.f32 %v402, %v745
    %v795 = vmul.f32 %v403, %v746
    %v796 = vmul.f32 %v404, %v747
    %v797 = vmul.f32 %v405, %v748
    %v798 = vmul.f32 %v406, %v749
    %v799 = vmul.f32 %v407, %v750
    %v800 = vmul.f32 %v408, %v751
    %v801 = vmul.f32 %v409, %v752
    %v802 = vmul.f32 %v410, %v753
    %v803 = vmul.f32 %v411, %v754
    %v804 = vmul.f32 %v412, %v755
    %v805 = vmul.f32 %v413, %v756
    %v806 = vmul.f32 %v414, %v757
    %v807 = vmul.f32 %v415, %v758
    %v808 = vmul.f32 %v416, %v759
    %v809 = vmul.f32 %v417, %v760
    %v810 = vmul.f32 %v418, %v761
    %v811 = vmul.f32 %v419, %v762
    %v812 = vmul.f32 %v420, %v763
    %v813 = vmul.f32 %v421, %v764
    %v814 = vmul.f32 %v422, %v765
    %v815 = vmul.f32 %v423, %v766
    %v816 = vmul.f32 %v424, %v767
    %v817 = vmul.f32 %v425, %v768
    %v818 = vmul.f32 %v426, %v769
    %v819 = vmul.f32 %v427, %v770
    %v820 = vmul.f32 %v428, %v771
    %v821 = vmul.f32 %v429, %v772
    %v822 = vmul.f32 %v430, %v773
    %v823 = vmul.f32 %v431, %v774
    %v824 = vmul.f32 %v432, %v775
    %v825 = vmul.f32 %v433, %v776
    %826 = vst [vmem:[#allocation7] sm:$0xff] %v777
    %827 = vst [vmem:[#allocation7 + $0x8] sm:$0xff] %v778
    %828 = vst [vmem:[#allocation7 + $0x10] sm:$0xff] %v779
    %829 = vst [vmem:[#allocation7 + $0x18] sm:$0xff] %v780
    %830 = vst [vmem:[#allocation7 + $0x20] sm:$0xff] %v781
    %831 = vst [vmem:[#allocation7 + $0x28] sm:$0xff] %v782
    %832 = vst [vmem:[#allocation7 + $0x30] sm:$0xff] %v783
    %833 = vst [vmem:[#allocation7 + $0x38] sm:$0xff] %v784
    %834 = vst [vmem:[#allocation7 + $0x40] sm:$0xff] %v785
    %835 = vst [vmem:[#allocation7 + $0x48] sm:$0xff] %v786
    %836 = vst [vmem:[#allocation7 + $0x50] sm:$0xff] %v787
    %837 = vst [vmem:[#allocation7 + $0x58] sm:$0xff] %v788
    %838 = vst [vmem:[#allocation7 + $0x60] sm:$0xff] %v789
    %839 = vst [vmem:[#allocation7 + $0x68] sm:$0xff] %v790
    %840 = vst [vmem:[#allocation7 + $0x70] sm:$0xff] %v791
    %841 = vst [vmem:[#allocation7 + $0x78] sm:$0xff] %v792
    %842 = vst [vmem:[#allocation7 + $0x80] sm:$0xff] %v793
    %843 = vst [vmem:[#allocation7 + $0x88] sm:$0xff] %v794
    %844 = vst [vmem:[#allocation7 + $0x90] sm:$0xff] %v795
    %845 = vst [vmem:[#allocation7 + $0x98] sm:$0xff] %v796
    %846 = vst [vmem:[#allocation7 + $0xa0] sm:$0xff] %v797
    %847 = vst [vmem:[#allocation7 + $0xa8] sm:$0xff] %v798
    %848 = vst [vmem:[#allocation7 + $0xb0] sm:$0xff] %v799
    %849 = vst [vmem:[#allocation7 + $0xb8] sm:$0xff] %v800
    %850 = vst [vmem:[#allocation7 + $0xc0] sm:$0xff] %v801
    %851 = vst [vmem:[#allocation7 + $0xc8] sm:$0xff] %v802
    %852 = vst [vmem:[#allocation7 + $0xd0] sm:$0xff] %v803
    %853 = vst [vmem:[#allocation7 + $0xd8] sm:$0xff] %v804
    %854 = vst [vmem:[#allocation7 + $0xe0] sm:$0xff] %v805
    %855 = vst [vmem:[#allocation7 + $0xe8] sm:$0xff] %v806
    %856 = vst [vmem:[#allocation7 + $0xf0] sm:$0xff] %v807
    %857 = vst [vmem:[#allocation7 + $0xf8] sm:$0xff] %v808
    %858 = vst [vmem:[#allocation7 + $0x100] sm:$0xff] %v809
    %859 = vst [vmem:[#allocation7 + $0x108] sm:$0xff] %v810
    %860 = vst [vmem:[#allocation7 + $0x110] sm:$0xff] %v811
    %861 = vst [vmem:[#allocation7 + $0x118] sm:$0xff] %v812
    %862 = vst [vmem:[#allocation7 + $0x120] sm:$0xff] %v813
    %863 = vst [vmem:[#allocation7 + $0x128] sm:$0xff] %v814
    %864 = vst [vmem:[#allocation7 + $0x130] sm:$0xff] %v815
    %865 = vst [vmem:[#allocation7 + $0x138] sm:$0xff] %v816
    %866 = vst [vmem:[#allocation7 + $0x140] sm:$0xff] %v817
    %867 = vst [vmem:[#allocation7 + $0x148] sm:$0xff] %v818
    %868 = vst [vmem:[#allocation7 + $0x150] sm:$0xff] %v819
    %869 = vst [vmem:[#allocation7 + $0x158] sm:$0xff] %v820
    %870 = vst [vmem:[#allocation7 + $0x160] sm:$0xff] %v821
    %871 = vst [vmem:[#allocation7 + $0x168] sm:$0xff] %v822
    %872 = vst [vmem:[#allocation7 + $0x170] sm:$0xff] %v823
    %873 = vst [vmem:[#allocation7 + $0x178] sm:$0xff] %v824
    %874 = vst [vmem:[#allocation7 + $0x180] sm:$0xff] %v825
    // Predicated region
    $region26: #{tpu_custom_call.1} parent=1 // pred_check
      _
    $region27: #{tpu_custom_call.1} parent=1 // pred_check_branch
      %876 = sbr.rel (0) target = $region29
    $region28: #{tpu_custom_call.1} parent=1 // pred_region
      %878 = vsyncadd [#allocation4], 0
      %s879 = sshll.u32 [#allocation7], 4
      %s880 = int_to_ptr.vmem [resolvable:$true] %s879
      %s881 = sshll.u32 %s4, 4
      %s882 = int_to_ptr.hbm [resolvable:$true] %s881
      %887 = dma.vmem_to_hbm [thread:$0]  %s880, 6272, %s882, [#allocation4], 128, 128, 8
    $region29: #{tpu_custom_call.1} parent=1 // pred_fallthru
      _
    // Predicated region
    $region30: #{tpu_custom_call.1} parent=1 // pred_check
      _
    $region31: #{tpu_custom_call.1} parent=1 // pred_check_branch
      %889 = sbr.rel (0) target = $region33
    $region32: #{tpu_custom_call.1} parent=1 // pred_region
      %891 = dma.done [#allocation4], 6272
    $region33: #{tpu_custom_call.1} parent=1 // pred_fallthru
      _
    %892 = vsyncpa [#allocation3], 1
    %893 = vsyncpa [#allocation6], 1
    %894 = vsyncpa [#allocation4], 1

</llo_original>
